<compile_context>
chip_gen: v7x
topology: tpu7x:2x2x1
jax: 0.10.0
libtpu: 0.0.40
codegen_flags: <defaults>
</compile_context>

<pallas_src>
from functools import partial

import jax
import jax.numpy as jnp
from jax.experimental import pallas as pl
from jax.experimental.pallas import tpu as pltpu

HIDDEN1 = 20
_LANE = 128   # lane width of the packed parameter slab


def _round_up(n, m):
    return ((n + m - 1) // m) * m


def _slab_layout(n_states, hidden, action_dim):
    """Row offsets of each parameter inside the packed (rows, 128) slab."""
    offs = {}
    r = 0
    for name, rows in (("w1", n_states), ("w2", hidden),
                       ("w3", hidden), ("w4", hidden)):
        offs[name] = r
        r += _round_up(rows, 8)
    offs["b"] = r          # biases b1..b4 occupy rows b, b+1, b+2, b+3
    r += 8
    return offs, _round_up(r, 8)


def pack_actor_params(params, n_states, hidden, action_dim):
    """Pack w1..w4 / b1..b4 into one (8,128)-aligned f32 slab (done once)."""
    offs, rows = _slab_layout(n_states, hidden, action_dim)
    slab = jnp.zeros((rows, _LANE), jnp.float32)
    slab = slab.at[offs["w1"]:offs["w1"] + n_states, :hidden].set(params["w1"])
    slab = slab.at[offs["w2"]:offs["w2"] + hidden, :hidden].set(params["w2"])
    slab = slab.at[offs["w3"]:offs["w3"] + hidden, :hidden].set(params["w3"])
    slab = slab.at[offs["w4"]:offs["w4"] + hidden, :action_dim].set(params["w4"])
    slab = slab.at[offs["b"] + 0, :hidden].set(params["b1"].reshape(-1))
    slab = slab.at[offs["b"] + 1, :hidden].set(params["b2"].reshape(-1))
    slab = slab.at[offs["b"] + 2, :hidden].set(params["b3"].reshape(-1))
    slab = slab.at[offs["b"] + 3, :action_dim].set(params["b4"].reshape(-1))
    return slab


def actor_kernel(x_ref, slab_ref, g_ref, action_ref, sampled_ref,
                 *, n_states, hidden, action_dim, offs):
    bf16 = jnp.bfloat16
    x = x_ref[...]

    # Recover parameters from the packed slab (static slices, no extra DMA).
    w1 = slab_ref[offs["w1"]:offs["w1"] + n_states, 0:hidden]
    w2 = slab_ref[offs["w2"]:offs["w2"] + hidden, 0:hidden]
    w3 = slab_ref[offs["w3"]:offs["w3"] + hidden, 0:hidden]
    w4 = slab_ref[offs["w4"]:offs["w4"] + hidden, 0:action_dim]
    b1 = slab_ref[offs["b"] + 0:offs["b"] + 1, 0:hidden]
    b2 = slab_ref[offs["b"] + 1:offs["b"] + 2, 0:hidden]
    b3 = slab_ref[offs["b"] + 2:offs["b"] + 3, 0:hidden]
    b4 = slab_ref[offs["b"] + 3:offs["b"] + 4, 0:action_dim]

    def dense(h, w, b):
        # bf16 MXU operands, f32 accumulation; bias-add stays f32.
        return jnp.dot(h.astype(bf16), w.astype(bf16),
                       preferred_element_type=jnp.float32) + b

    h = jnp.maximum(dense(x, w1, b1), 0.0)
    h = jnp.maximum(dense(h, w2, b2), 0.0)
    h = jnp.maximum(dense(h, w3, b3), 0.0)
    a = dense(h, w4, b4)
    action_ref[...] = a

    # torch.softmax(action, dim=0) in log space (numerically stable).
    m = jnp.max(a, axis=0, keepdims=True)
    lse = m + jnp.log(jnp.sum(jnp.exp(a - m), axis=0, keepdims=True))
    logz = a - lse

    # Fused Categorical sample via Gumbel-max over the last axis.
    y = logz + g_ref[...]
    # Explicit max/where/min formulation (guaranteed Mosaic lowering; a
    # jnp.argmax reduce-with-index is not guaranteed to lower on all jax
    # versions and the epilogue is micro-noise on this latency-bound kernel).
    y_max = jnp.max(y, axis=1, keepdims=True)
    idx = jax.lax.broadcasted_iota(jnp.int32, y.shape, 1)
    sampled = jnp.min(jnp.where(y == y_max, idx, jnp.int32(action_dim)),
                      axis=1, keepdims=True)
    sampled_ref[...] = sampled.astype(jnp.int32)


@partial(jax.jit, static_argnames=("n_states", "hidden", "action_dim"))
def _actor_pallas(x, slab, gumbel, *, n_states, hidden, action_dim):
    B = x.shape[0]
    offs, _ = _slab_layout(n_states, hidden, action_dim)
    kernel = partial(actor_kernel, n_states=n_states, hidden=hidden,
                     action_dim=action_dim, offs=offs)

    flops = 2 * B * (n_states * hidden + 2 * hidden * hidden
                     + hidden * action_dim)
    bytes_accessed = 4 * (x.size + slab.size + gumbel.size
                          + B * action_dim + B)
    cost = pl.CostEstimate(flops=flops,
                           transcendentals=B * action_dim + action_dim,
                           bytes_accessed=bytes_accessed)

    vmem = pl.BlockSpec(memory_space=pltpu.MemorySpace.VMEM)
    action, sampled = pl.pallas_call(
        kernel,
        out_shape=(
            jax.ShapeDtypeStruct((B, action_dim), jnp.float32),
            jax.ShapeDtypeStruct((B, 1), jnp.int32),
        ),
        in_specs=[vmem, vmem, vmem],
        out_specs=(vmem, vmem),
        cost_estimate=cost,
    )(x, slab, gumbel)
    return action, sampled.reshape(B)


def actor_forward(state, slab, key, *, n_states, hidden, action_dim):
    """Full Actor.forward: returns (action, sampled_action)."""
    gumbel = jax.random.gumbel(key, (state.shape[0], action_dim),
                               dtype=jnp.float32)
    return _actor_pallas(state, slab, gumbel, n_states=n_states,
                         hidden=hidden, action_dim=action_dim)


def init_actor_params(key, n_states, action_dim, hidden=HIDDEN1):
    """nn.Linear default init U(-1/sqrt(fan_in), 1/sqrt(fan_in));
    weights stored transposed ([in, out]) relative to PyTorch."""
    dims = [(n_states, hidden), (hidden, hidden),
            (hidden, hidden), (hidden, action_dim)]
    params = {}
    keys = jax.random.split(key, 2 * len(dims))
    for i, (fan_in, fan_out) in enumerate(dims):
        bound = 1.0 / jnp.sqrt(jnp.float32(fan_in))
        params[f"w{i + 1}"] = jax.random.uniform(
            keys[2 * i], (fan_in, fan_out),
            minval=-bound, maxval=bound, dtype=jnp.float32)
        params[f"b{i + 1}"] = jax.random.uniform(
            keys[2 * i + 1], (1, fan_out),
            minval=-bound, maxval=bound, dtype=jnp.float32)
    return params


if __name__ == "__main__":
    n_states = 16
    action_dim = 4
    batch = 8

    root = jax.random.PRNGKey(0)
    k_param, k_state, k_sample = jax.random.split(root, 3)

    params = init_actor_params(k_param, n_states, action_dim, HIDDEN1)
    slab = pack_actor_params(params, n_states, HIDDEN1, action_dim)
    state = jax.random.normal(k_state, (batch, n_states), dtype=jnp.float32)

    action, sampled_action = actor_forward(
        state, slab, k_sample,
        n_states=n_states, hidden=HIDDEN1, action_dim=action_dim)
    jax.block_until_ready((action, sampled_action))

    # Reference for the deterministic MLP output (same bf16-operand dots).
    bf16 = jnp.bfloat16
    ws = [params[f"w{i}"] for i in range(1, 5)]
    bs = [params[f"b{i}"] for i in range(1, 5)]
    h = state
    for i in range(3):
        h = jnp.maximum(
            jnp.dot(h.astype(bf16), ws[i].astype(bf16),
                    preferred_element_type=jnp.float32) + bs[i], 0.0)
    ref_action = jnp.dot(h.astype(bf16), ws[3].astype(bf16),
                         preferred_element_type=jnp.float32) + bs[3]

    assert action.shape == (batch, action_dim)
    assert sampled_action.shape == (batch,)
    assert sampled_action.dtype == jnp.int32
    assert bool(jnp.all((sampled_action >= 0) & (sampled_action < action_dim)))
    assert bool(jnp.allclose(action, ref_action, atol=2e-2, rtol=2e-2))
    print("KERNEL_OK")
</pallas_src>

<mosaic_0001>
module attributes {stable_mosaic.version = 11 : i64} {
  func.func @actor_kernel(%arg0: memref<8x16xf32, #tpu.memory_space<vmem>>, %arg1: memref<96x128xf32, #tpu.memory_space<vmem>>, %arg2: memref<8x4xf32, #tpu.memory_space<vmem>>, %arg3: memref<8x4xf32, #tpu.memory_space<vmem>>, %arg4: memref<8x1xi32, #tpu.memory_space<vmem>>) attributes {dimension_semantics = [], scalar_prefetch = 0 : i64, scratch_operands = 0 : i64, tpu.core_type = #tpu.core_type<tc>} {
    %c0 = arith.constant 0 : index
    %c0_0 = arith.constant 0 : index
    %0 = vector.load %arg0[%c0, %c0_0] : memref<8x16xf32, #tpu.memory_space<vmem>>, vector<8x16xf32>
    %c0_1 = arith.constant 0 : index
    %c0_2 = arith.constant 0 : index
    %1 = vector.load %arg1[%c0_1, %c0_2] : memref<96x128xf32, #tpu.memory_space<vmem>>, vector<16x20xf32>
    %c16 = arith.constant 16 : index
    %c0_3 = arith.constant 0 : index
    %2 = vector.load %arg1[%c16, %c0_3] : memref<96x128xf32, #tpu.memory_space<vmem>>, vector<20x20xf32>
    %c40 = arith.constant 40 : index
    %c0_4 = arith.constant 0 : index
    %3 = vector.load %arg1[%c40, %c0_4] : memref<96x128xf32, #tpu.memory_space<vmem>>, vector<20x20xf32>
    %c64 = arith.constant 64 : index
    %c0_5 = arith.constant 0 : index
    %4 = vector.load %arg1[%c64, %c0_5] : memref<96x128xf32, #tpu.memory_space<vmem>>, vector<20x4xf32>
    %c88 = arith.constant 88 : index
    %c0_6 = arith.constant 0 : index
    %5 = vector.load %arg1[%c88, %c0_6] : memref<96x128xf32, #tpu.memory_space<vmem>>, vector<1x20xf32>
    %c89 = arith.constant 89 : index
    %c0_7 = arith.constant 0 : index
    %6 = vector.load %arg1[%c89, %c0_7] : memref<96x128xf32, #tpu.memory_space<vmem>>, vector<1x20xf32>
    %c90 = arith.constant 90 : index
    %c0_8 = arith.constant 0 : index
    %7 = vector.load %arg1[%c90, %c0_8] : memref<96x128xf32, #tpu.memory_space<vmem>>, vector<1x20xf32>
    %c91 = arith.constant 91 : index
    %c0_9 = arith.constant 0 : index
    %8 = vector.load %arg1[%c91, %c0_9] : memref<96x128xf32, #tpu.memory_space<vmem>>, vector<1x4xf32>
    %9 = arith.truncf %0 : vector<8x16xf32> to vector<8x16xbf16>
    %10 = arith.truncf %1 : vector<16x20xf32> to vector<16x20xbf16>
    %cst = arith.constant dense<0.000000e+00> : vector<8x20xf32>
    %11 = tpu.matmul %9, %10, %cst {dimension_numbers = #tpu.dot_dimension_numbers<[1], [0], [0], [1], [0, 0, 1, 1], [], []>} : vector<8x16xbf16>, vector<16x20xbf16>, vector<8x20xf32> -> vector<8x20xf32>
    %12 = vector.broadcast %5 : vector<1x20xf32> to vector<8x20xf32>
    %13 = arith.addf %11, %12 : vector<8x20xf32>
    %cst_10 = arith.constant 0.000000e+00 : f32
    %14 = vector.broadcast %cst_10 : f32 to vector<8x20xf32>
    %15 = arith.maximumf %13, %14 : vector<8x20xf32>
    %16 = arith.truncf %15 : vector<8x20xf32> to vector<8x20xbf16>
    %17 = arith.truncf %2 : vector<20x20xf32> to vector<20x20xbf16>
    %cst_11 = arith.constant dense<0.000000e+00> : vector<8x20xf32>
    %18 = tpu.matmul %16, %17, %cst_11 {dimension_numbers = #tpu.dot_dimension_numbers<[1], [0], [0], [1], [0, 0, 1, 1], [], []>} : vector<8x20xbf16>, vector<20x20xbf16>, vector<8x20xf32> -> vector<8x20xf32>
    %19 = vector.broadcast %6 : vector<1x20xf32> to vector<8x20xf32>
    %20 = arith.addf %18, %19 : vector<8x20xf32>
    %cst_12 = arith.constant 0.000000e+00 : f32
    %21 = vector.broadcast %cst_12 : f32 to vector<8x20xf32>
    %22 = arith.maximumf %20, %21 : vector<8x20xf32>
    %23 = arith.truncf %22 : vector<8x20xf32> to vector<8x20xbf16>
    %24 = arith.truncf %3 : vector<20x20xf32> to vector<20x20xbf16>
    %cst_13 = arith.constant dense<0.000000e+00> : vector<8x20xf32>
    %25 = tpu.matmul %23, %24, %cst_13 {dimension_numbers = #tpu.dot_dimension_numbers<[1], [0], [0], [1], [0, 0, 1, 1], [], []>} : vector<8x20xbf16>, vector<20x20xbf16>, vector<8x20xf32> -> vector<8x20xf32>
    %26 = vector.broadcast %7 : vector<1x20xf32> to vector<8x20xf32>
    %27 = arith.addf %25, %26 : vector<8x20xf32>
    %cst_14 = arith.constant 0.000000e+00 : f32
    %28 = vector.broadcast %cst_14 : f32 to vector<8x20xf32>
    %29 = arith.maximumf %27, %28 : vector<8x20xf32>
    %30 = arith.truncf %29 : vector<8x20xf32> to vector<8x20xbf16>
    %31 = arith.truncf %4 : vector<20x4xf32> to vector<20x4xbf16>
    %cst_15 = arith.constant dense<0.000000e+00> : vector<8x4xf32>
    %32 = tpu.matmul %30, %31, %cst_15 {dimension_numbers = #tpu.dot_dimension_numbers<[1], [0], [0], [1], [0, 0, 1, 1], [], []>} : vector<8x20xbf16>, vector<20x4xbf16>, vector<8x4xf32> -> vector<8x4xf32>
    %33 = vector.broadcast %8 : vector<1x4xf32> to vector<8x4xf32>
    %34 = arith.addf %32, %33 : vector<8x4xf32>
    %c0_16 = arith.constant 0 : index
    %c0_17 = arith.constant 0 : index
    %35 = vector.load %arg3[%c0_16, %c0_17] : memref<8x4xf32, #tpu.memory_space<vmem>>, vector<8x4xf32>
    tpu.vector_store %arg3[%c0_16, %c0_17], %34 {strides = array<i32>} : memref<8x4xf32, #tpu.memory_space<vmem>>, vector<8x4xf32>,
    %cst_18 = arith.constant dense<0xFF800000> : vector<4xf32>
    %36 = vector.multi_reduction <maximumf>, %34, %cst_18 [0] : vector<8x4xf32> to vector<4xf32>
    %37 = vector.shape_cast %36 : vector<4xf32> to vector<1x4xf32>
    %38 = vector.broadcast %37 : vector<1x4xf32> to vector<8x4xf32>
    %39 = arith.subf %34, %38 : vector<8x4xf32>
    %40 = math.exp %39 : vector<8x4xf32>
    %cst_19 = arith.constant dense<0.000000e+00> : vector<4xf32>
    %41 = vector.multi_reduction <add>, %40, %cst_19 [0] : vector<8x4xf32> to vector<4xf32>
    %42 = vector.shape_cast %41 : vector<4xf32> to vector<1x4xf32>
    %43 = math.log %42 : vector<1x4xf32>
    %44 = arith.addf %37, %43 : vector<1x4xf32>
    %45 = vector.broadcast %44 : vector<1x4xf32> to vector<8x4xf32>
    %46 = arith.subf %34, %45 : vector<8x4xf32>
    %c0_20 = arith.constant 0 : index
    %c0_21 = arith.constant 0 : index
    %47 = vector.load %arg2[%c0_20, %c0_21] : memref<8x4xf32, #tpu.memory_space<vmem>>, vector<8x4xf32>
    %48 = arith.addf %46, %47 : vector<8x4xf32>
    %cst_22 = arith.constant dense<0xFF800000> : vector<8xf32>
    %49 = vector.multi_reduction <maximumf>, %48, %cst_22 [1] : vector<8x4xf32> to vector<8xf32>
    %50 = vector.shape_cast %49 : vector<8xf32> to vector<8x1xf32>
    %51 = tpu.iota {dimensions = array<i32: 1>} : vector<8x4xi32>
    %52 = vector.broadcast %50 : vector<8x1xf32> to vector<8x4xf32>
    %53 = arith.cmpf oeq, %48, %52 : vector<8x4xf32>
    %c4_i32 = arith.constant 4 : i32
    %54 = vector.broadcast %c4_i32 : i32 to vector<8x4xi32>
    %55 = arith.select %53, %51, %54 : vector<8x4xi1>, vector<8x4xi32>
    %cst_23 = arith.constant dense<2147483647> : vector<8xi32>
    %56 = vector.multi_reduction <minsi>, %55, %cst_23 [1] : vector<8x4xi32> to vector<8xi32>
    %57 = vector.shape_cast %56 : vector<8xi32> to vector<8x1xi32>
    %c0_24 = arith.constant 0 : index
    %c0_25 = arith.constant 0 : index
    %58 = vector.load %arg4[%c0_24, %c0_25] : memref<8x1xi32, #tpu.memory_space<vmem>>, vector<8x1xi32>
    tpu.vector_store %arg4[%c0_24, %c0_25], %57 {strides = array<i32>} : memref<8x1xi32, #tpu.memory_space<vmem>>, vector<8x1xi32>,
    return
  }
}

</mosaic_0001>

<llo_original>
// kernel: _actor_pallas.1
$region0: #{_actor_pallas.1}
  #allocation0 [shape = 'u32[]', space=smem, size = 0x4, offset = 0x4, fixed_abs, tag = 'smem constant byte address 0x4 - core index']
  #allocation1 [shape = 'u32[144,128]{1,0:T(1,128)}', space=vmem, size = 0x12000, scoped, tag = 'internal scratch']
  %s0 = inlined_call_operand.vmem [shape: f32[8,16], index: 0, kind: input, shape index: {}]
  %s1 = inlined_call_operand.hbm [shape: f32[96,128], index: 1, kind: input, shape index: {}]
  %s2 = inlined_call_operand.vmem [shape: f32[8,4], index: 2, kind: input, shape index: {}]
  %s3 = inlined_call_operand.vmem [shape: f32[8,4], index: 3, kind: output, shape index: {0}]
  %s4 = inlined_call_operand.vmem [shape: s32[8,1], index: 4, kind: output, shape index: {1}]
  %5 = xla_tuple %s3, %s4
  %s6 = sld [smem:[#allocation0]]
  $region34: #{_actor_pallas.1} parent=0
    _
  %s8 = ssub.s32 1, %s6
  %s9 = scalar_select 0, %s8, %s6
  $region1: #{_actor_pallas.1} parent=0
    #allocation2 [shape = 'u8[49152]{0}', space=vmem, size = 0xc000, scoped, tag = 'input window, operand 1, single buffered']
    #allocation3 [shape = 's32[1]{0}', space=sflag, size = 0x4, scoped, tag = 'scoped memory for _actor_pallas.1']
    %10 = vsyncpa [#allocation3], 0
    // Predicated region
    $region2: #{_actor_pallas.1} parent=1 // pred_check
      _
    $region3: #{_actor_pallas.1} parent=1 // pred_check_branch
      %12 = sbr.rel (0) target = $region5
    $region4: #{_actor_pallas.1} parent=1 // pred_region
      _
    $region5: #{_actor_pallas.1} parent=1 // pred_fallthru
      _
    // Predicated region
    $region6: #{_actor_pallas.1} parent=1 // pred_check
      _
    $region7: #{_actor_pallas.1} parent=1 // pred_check_branch
      %14 = sbr.rel (0) target = $region9
    $region8: #{_actor_pallas.1} parent=1 // pred_region
      %s16 = ssub.s32 1536, 1536
      %17 = vsyncadd [#allocation3], %s16
      %s18 = sshll.u32 [#allocation2], 4
      %s19 = int_to_ptr.vmem [resolvable:$true] %s18
      %24 = dma.hbm_to_vmem [thread:$0]  %s1, 1536, %s19, [#allocation3], 128, 128, 8
    $region9: #{_actor_pallas.1} parent=1 // pred_fallthru
      _
    // Predicated region
    $region10: #{_actor_pallas.1} parent=1 // pred_check
      _
    $region11: #{_actor_pallas.1} parent=1 // pred_check_branch
      %26 = sbr.rel (0) target = $region13
    $region12: #{_actor_pallas.1} parent=1 // pred_region
      _
    $region13: #{_actor_pallas.1} parent=1 // pred_fallthru
      _
    // Predicated region
    $region14: #{_actor_pallas.1} parent=1 // pred_check
      _
    $region15: #{_actor_pallas.1} parent=1 // pred_check_branch
      %28 = sbr.rel (0) target = $region17
    $region16: #{_actor_pallas.1} parent=1 // pred_region
      %29 = dma.done [#allocation3], 1536
    $region17: #{_actor_pallas.1} parent=1 // pred_fallthru
      _
    %v31 = vld [vmem:[%s0] sm:$0xff]
    %v32 = vld [vmem:[#allocation2] sm:$0xff]
    %v33 = vld [vmem:[#allocation2 + $0x8] sm:$0xff]
    %v34 = vld [vmem:[#allocation2 + $0x10] sm:$0xff]
    %v35 = vld [vmem:[#allocation2 + $0x18] sm:$0xff]
    %v36 = vld [vmem:[#allocation2 + $0x20] sm:$0xf]
    %v37 = vld [vmem:[#allocation2 + $0x28] sm:$0xff]
    %v38 = vld [vmem:[#allocation2 + $0x30] sm:$0xff]
    %v39 = vld [vmem:[#allocation2 + $0x38] sm:$0xf]
    %v40 = vld [vmem:[#allocation2 + $0x40] sm:$0xff]
    %v41 = vld [vmem:[#allocation2 + $0x48] sm:$0xff]
    %v42 = vld [vmem:[#allocation2 + $0x50] sm:$0xf]
    %v43 = vld [vmem:[#allocation2 + $0x58] sm:$0x1]
    %v44 = vld [vmem:[#allocation2 + $0x59] sm:$0x1]
    %v45 = vld [vmem:[#allocation2 + $0x5a] sm:$0x1]
    %v46 = vld [vmem:[#allocation2 + $0x5b] sm:$0x1]
    %v47 = vpack.c.bf16 %v31, %v31
    %v48 = vpack.c.bf16 %v33, %v32
    %v49 = vlaneseq
    %v50 = vshrl.u32 %v49, 7
    %v51 = vsub.s32 0, %v50
    %v52 = vrot.slane %v43, %v51
    %vm53 = vcmask 130048
    %v55 = vsel %vm53, %v47, 0
    %57 = vmatprep.subr.bf16.mxu0 0
    %58 = vmatpush1.bf16.msra.mxu0 %v48
    %59 = vmatprep.subr.bf16.mxu0 0
    %60 = vmatpush1.bf16.msra.mxu0 0
    %61 = vmatprep.subr.bf16.mxu0 0
    %62 = vmatpush1.bf16.msra.mxu0 0
    %63 = vmatprep.subr.bf16.mxu0 0
    %64 = vmatpush1.bf16.msra.mxu0 0
    %65 = vmatprep.subr.bf16.mxu0 0
    %66 = vmatpush1.bf16.msra.mxu0 0
    %67 = vmatprep.subr.bf16.mxu0 0
    %68 = vmatpush1.bf16.msra.mxu0 0
    %69 = vmatprep.subr.bf16.mxu0 0
    %70 = vmatpush1.bf16.msra.mxu0 0
    %71 = vmatprep.subr.bf16.mxu0 0
    %72 = vmatpush1.bf16.msra.mxu0 0
    %73 = vmatprep.subr.bf16.mxu0 0
    %74 = vmatpush1.bf16.msra.mxu0 0
    %75 = vmatprep.subr.bf16.mxu0 0
    %76 = vmatpush1.bf16.msra.mxu0 0
    %77 = vmatprep.subr.bf16.mxu0 0
    %78 = vmatpush1.bf16.msra.mxu0 0
    %79 = vmatprep.subr.bf16.mxu0 0
    %80 = vmatpush1.bf16.msra.mxu0 0
    %81 = vmatprep.subr.bf16.mxu0 0
    %82 = vmatpush1.bf16.msra.mxu0 0
    %83 = vmatprep.subr.bf16.mxu0 0
    %84 = vmatpush1.bf16.msra.mxu0 0
    %85 = vmatprep.subr.bf16.mxu0 0
    %86 = vmatpush1.bf16.msra.mxu0 0
    %87 = vmatprep.subr.bf16.mxu0 0
    %88 = vmatpush1.bf16.msra.mxu0 0
    %89 = vmatprep.mubr.bf16.mxu0 0
    %90 = vmatmul.mubr.bf16.gmra.mrb[0].mxu0 %v55
    %v91 = vpop.f32.mrb[0].mxu0
    %v92 = vadd.f32 %v52, %v91
    %v93 = vpop.f32.mrb[0].mxu0
    %v94 = vpop.f32.mrb[0].mxu0
    %v95 = vpop.f32.mrb[0].mxu0
    %96 = vdwg.mxu0
    %v97 = vmax.f32 %v92, 0.0
    %v98 = vpack.c.bf16 %v97, %v97
    %v99 = vpack.c.bf16 %v35, %v34
    %v100 = vpack.c.bf16 %v36, %v36
    %v101 = vlaneseq
    %v102 = vshrl.u32 %v101, 7
    %v103 = vsub.s32 0, %v102
    %v104 = vrot.slane %v44, %v103
    %vm105 = vcmask 162816
    %v107 = vsel %vm105, %v98, 0
    %vm109 = vcmask 1041408
    %v111 = vsel %vm109, %v100, 0
    %113 = vmatprep.subr.bf16.mxu0 0
    %114 = vmatpush1.bf16.msra.mxu0 %v99
    %115 = vmatprep.subr.bf16.mxu0 0
    %116 = vmatpush1.bf16.msra.mxu0 %v111
    %117 = vmatprep.subr.bf16.mxu0 0
    %118 = vmatpush1.bf16.msra.mxu0 0
    %119 = vmatprep.subr.bf16.mxu0 0
    %120 = vmatpush1.bf16.msra.mxu0 0
    %121 = vmatprep.subr.bf16.mxu0 0
    %122 = vmatpush1.bf16.msra.mxu0 0
    %123 = vmatprep.subr.bf16.mxu0 0
    %124 = vmatpush1.bf16.msra.mxu0 0
    %125 = vmatprep.subr.bf16.mxu0 0
    %126 = vmatpush1.bf16.msra.mxu0 0
    %127 = vmatprep.subr.bf16.mxu0 0
    %128 = vmatpush1.bf16.msra.mxu0 0
    %129 = vmatprep.subr.bf16.mxu0 0
    %130 = vmatpush1.bf16.msra.mxu0 0
    %131 = vmatprep.subr.bf16.mxu0 0
    %132 = vmatpush1.bf16.msra.mxu0 0
    %133 = vmatprep.subr.bf16.mxu0 0
    %134 = vmatpush1.bf16.msra.mxu0 0
    %135 = vmatprep.subr.bf16.mxu0 0
    %136 = vmatpush1.bf16.msra.mxu0 0
    %137 = vmatprep.subr.bf16.mxu0 0
    %138 = vmatpush1.bf16.msra.mxu0 0
    %139 = vmatprep.subr.bf16.mxu0 0
    %140 = vmatpush1.bf16.msra.mxu0 0
    %141 = vmatprep.subr.bf16.mxu0 0
    %142 = vmatpush1.bf16.msra.mxu0 0
    %143 = vmatprep.subr.bf16.mxu0 0
    %144 = vmatpush1.bf16.msra.mxu0 0
    %145 = vmatprep.mubr.bf16.mxu0 0
    %146 = vmatmul.mubr.bf16.gmra.mrb[0].mxu0 %v107
    %v147 = vpop.f32.mrb[0].mxu0
    %v148 = vadd.f32 %v104, %v147
    %v149 = vpop.f32.mrb[0].mxu0
    %v150 = vpop.f32.mrb[0].mxu0
    %v151 = vpop.f32.mrb[0].mxu0
    %152 = vdwg.mxu0
    %v153 = vmax.f32 %v148, 0.0
    %v154 = vpack.c.bf16 %v153, %v153
    %v155 = vpack.c.bf16 %v38, %v37
    %v156 = vpack.c.bf16 %v39, %v39
    %v157 = vlaneseq
    %v158 = vshrl.u32 %v157, 7
    %v159 = vsub.s32 0, %v158
    %v160 = vrot.slane %v45, %v159
    %v162 = vsel %vm105, %v154, 0
    %v165 = vsel %vm109, %v156, 0
    %167 = vmatprep.subr.bf16.mxu0 0
    %168 = vmatpush1.bf16.msra.mxu0 %v155
    %169 = vmatprep.subr.bf16.mxu0 0
    %170 = vmatpush1.bf16.msra.mxu0 %v165
    %171 = vmatprep.subr.bf16.mxu0 0
    %172 = vmatpush1.bf16.msra.mxu0 0
    %173 = vmatprep.subr.bf16.mxu0 0
    %174 = vmatpush1.bf16.msra.mxu0 0
    %175 = vmatprep.subr.bf16.mxu0 0
    %176 = vmatpush1.bf16.msra.mxu0 0
    %177 = vmatprep.subr.bf16.mxu0 0
    %178 = vmatpush1.bf16.msra.mxu0 0
    %179 = vmatprep.subr.bf16.mxu0 0
    %180 = vmatpush1.bf16.msra.mxu0 0
    %181 = vmatprep.subr.bf16.mxu0 0
    %182 = vmatpush1.bf16.msra.mxu0 0
    %183 = vmatprep.subr.bf16.mxu0 0
    %184 = vmatpush1.bf16.msra.mxu0 0
    %185 = vmatprep.subr.bf16.mxu0 0
    %186 = vmatpush1.bf16.msra.mxu0 0
    %187 = vmatprep.subr.bf16.mxu0 0
    %188 = vmatpush1.bf16.msra.mxu0 0
    %189 = vmatprep.subr.bf16.mxu0 0
    %190 = vmatpush1.bf16.msra.mxu0 0
    %191 = vmatprep.subr.bf16.mxu0 0
    %192 = vmatpush1.bf16.msra.mxu0 0
    %193 = vmatprep.subr.bf16.mxu0 0
    %194 = vmatpush1.bf16.msra.mxu0 0
    %195 = vmatprep.subr.bf16.mxu0 0
    %196 = vmatpush1.bf16.msra.mxu0 0
    %197 = vmatprep.subr.bf16.mxu0 0
    %198 = vmatpush1.bf16.msra.mxu0 0
    %199 = vmatprep.mubr.bf16.mxu0 0
    %200 = vmatmul.mubr.bf16.gmra.mrb[0].mxu0 %v162
    %v201 = vpop.f32.mrb[0].mxu0
    %v202 = vadd.f32 %v160, %v201
    %v203 = vpop.f32.mrb[0].mxu0
    %v204 = vpop.f32.mrb[0].mxu0
    %v205 = vpop.f32.mrb[0].mxu0
    %206 = vdwg.mxu0
    %v207 = vmax.f32 %v202, 0.0
    %v208 = vpack.c.bf16 %v207, %v207
    %v209 = vpack.c.bf16 %v41, %v40
    %v210 = vpack.c.bf16 %v42, %v42
    %v211 = vlaneseq
    %v212 = vshrl.u32 %v211, 7
    %v213 = vsub.s32 0, %v212
    %v214 = vrot.slane %v46, %v213
    %v216 = vsel %vm105, %v208, 0
    %v219 = vsel %vm109, %v210, 0
    %221 = vmatprep.subr.bf16.mxu0 0
    %222 = vmatpush1.bf16.msra.mxu0 %v209
    %223 = vmatprep.subr.bf16.mxu0 0
    %224 = vmatpush1.bf16.msra.mxu0 %v219
    %225 = vmatprep.subr.bf16.mxu0 0
    %226 = vmatpush1.bf16.msra.mxu0 0
    %227 = vmatprep.subr.bf16.mxu0 0
    %228 = vmatpush1.bf16.msra.mxu0 0
    %229 = vmatprep.subr.bf16.mxu0 0
    %230 = vmatpush1.bf16.msra.mxu0 0
    %231 = vmatprep.subr.bf16.mxu0 0
    %232 = vmatpush1.bf16.msra.mxu0 0
    %233 = vmatprep.subr.bf16.mxu0 0
    %234 = vmatpush1.bf16.msra.mxu0 0
    %235 = vmatprep.subr.bf16.mxu0 0
    %236 = vmatpush1.bf16.msra.mxu0 0
    %237 = vmatprep.subr.bf16.mxu0 0
    %238 = vmatpush1.bf16.msra.mxu0 0
    %239 = vmatprep.subr.bf16.mxu0 0
    %240 = vmatpush1.bf16.msra.mxu0 0
    %241 = vmatprep.subr.bf16.mxu0 0
    %242 = vmatpush1.bf16.msra.mxu0 0
    %243 = vmatprep.subr.bf16.mxu0 0
    %244 = vmatpush1.bf16.msra.mxu0 0
    %245 = vmatprep.subr.bf16.mxu0 0
    %246 = vmatpush1.bf16.msra.mxu0 0
    %247 = vmatprep.subr.bf16.mxu0 0
    %248 = vmatpush1.bf16.msra.mxu0 0
    %249 = vmatprep.subr.bf16.mxu0 0
    %250 = vmatpush1.bf16.msra.mxu0 0
    %251 = vmatprep.subr.bf16.mxu0 0
    %252 = vmatpush1.bf16.msra.mxu0 0
    %253 = vmatprep.mubr.bf16.mxu0 0
    %254 = vmatmul.mubr.bf16.gmra.mrb[0].mxu0 %v216
    %v255 = vpop.f32.mrb[0].mxu0
    %v256 = vadd.f32 %v214, %v255
    %v257 = vpop.f32.mrb[0].mxu0
    %v258 = vpop.f32.mrb[0].mxu0
    %v259 = vpop.f32.mrb[0].mxu0
    %260 = vdwg.mxu0
    %vm261 = vcmask 31744
    %262 = vst.msk [vmem:[%s3] sm:$0xff] %vm261, %v256
    %v263 = vsel %vm261, %v256, -inf
    %v264 = vrot.slane %v263, 4
    %v265 = vmax.f32 %v263, %v264
    %v266 = vrot.slane %v265, 2
    %v267 = vmax.f32 %v265, %v266
    %v268 = vrot.slane %v267, 1
    %v269 = vmax.f32 %v267, %v268
    %v270 = vsub.f32 %v256, %v269
    %v271 = vmul.f32 %v270, 1.442695
    %v272 = vpow.pop %v271
    %v273 = vsel %vm261, %v272, 0.0
    %v274 = vrot.slane %v273, 4
    %v275 = vadd.f32 %v273, %v274
    %v276 = vrot.slane %v275, 2
    %v277 = vadd.f32 %v275, %v276
    %v278 = vrot.slane %v277, 1
    %v279 = vadd.f32 %v277, %v278
    %v280 = vlog2.pop %v279
    %v281 = vmul.f32 %v280, 0.6931472
    %v282 = vadd.f32 %v269, %v281
    %v283 = vsub.f32 %v256, %v282
    %v284 = vld [vmem:[%s2] sm:$0xff]
    %v285 = vadd.f32 %v283, %v284
    %v286 = vsel %vm261, %v285, -inf
    %287 = vmax.xlane.f32.xlu0 %v286
    %v288 = vpop.xlane.xlu0 %287
    %v289 = vlaneseq
    %v290 = vand.u32 %v289, 127
    %vm291 = vcmp.eq.f32.partialorder %v285, %v288
    %v292 = vsel %vm291, %v290, 4
    %v293 = vsel %vm261, %v292, 2147483647
    %v294 = vand.u32 %v293, 65535
    %v295 = vshra.s32 %v293, 16
    %v296 = vcvt.s32.f32 %v294
    %v297 = vcvt.s32.f32 %v295
    %298 = vmin.xlane.f32.xlu0 %v297
    %v299 = vpop.xlane.xlu0 %298
    %vm300 = vcmp.eq.f32.partialorder %v297, %v299
    %v301 = vsel %vm300, %v296, inf
    %302 = vmin.xlane.f32.xlu0 %v301
    %v303 = vpop.xlane.xlu0 %302
    %v304 = vcvt.f32.s32 %v303
    %v305 = vcvt.f32.s32 %v299
    %v306 = vshll.u32 %v305, 16
    %v307 = vadd.s32 %v306, %v304
    %vm308 = vcmask 7168
    %309 = vst.msk [vmem:[%s4] sm:$0xff] %vm308, %v307
    // Predicated region
    $region18: #{_actor_pallas.1} parent=1 // pred_check
      _
    $region19: #{_actor_pallas.1} parent=1 // pred_check_branch
      %311 = sbr.rel (0) target = $region21
    $region20: #{_actor_pallas.1} parent=1 // pred_region
      _
    $region21: #{_actor_pallas.1} parent=1 // pred_fallthru
      _
    // Predicated region
    $region22: #{_actor_pallas.1} parent=1 // pred_check
      _
    $region23: #{_actor_pallas.1} parent=1 // pred_check_branch
      %313 = sbr.rel (0) target = $region25
    $region24: #{_actor_pallas.1} parent=1 // pred_region
      _
    $region25: #{_actor_pallas.1} parent=1 // pred_fallthru
      _
    // Predicated region
    $region26: #{_actor_pallas.1} parent=1 // pred_check
      _
    $region27: #{_actor_pallas.1} parent=1 // pred_check_branch
      %315 = sbr.rel (0) target = $region29
    $region28: #{_actor_pallas.1} parent=1 // pred_region
      _
    $region29: #{_actor_pallas.1} parent=1 // pred_fallthru
      _
    // Predicated region
    $region30: #{_actor_pallas.1} parent=1 // pred_check
      _
    $region31: #{_actor_pallas.1} parent=1 // pred_check_branch
      %317 = sbr.rel (0) target = $region33
    $region32: #{_actor_pallas.1} parent=1 // pred_region
      _
    $region33: #{_actor_pallas.1} parent=1 // pred_fallthru
      _
    %318 = vsyncpa [#allocation3], 1

</llo_original>
